<compile_context>
chip_gen: v6e
topology: v6e:2x2x1
jax: 0.10.0
libtpu: 0.0.40
codegen_flags: <defaults>
</compile_context>

<pallas_src>
import functools

import jax
import jax.numpy as jnp
from jax import lax
from jax.experimental import pallas as pl
from jax.experimental.pallas import tpu as pltpu

LN_EPS = 1e-5  # PyTorch nn.LayerNorm default


def _resnet_ensemble_kernel(x_ref, vec_ref, w1_ref, w2_ref, o_ref, *, weights_resident):
    """One (batch-tile i, residual-block j) grid step.

    x_ref / o_ref : (tile_b, K, D) f32   (o_ref = resident residual carry across j)
    vec_ref       : (1, 8, K, D)   f32   rows: gr1, br1, s1, b1, r2, s2, b2, pad
    w1_ref/w2_ref : (n_blocks, D, D) bf16 if resident, else (1, D, D); (in, out) layout
    """
    j = pl.program_id(1)

    @pl.when(j == 0)
    def _():
        o_ref[...] = x_ref[...].astype(jnp.float32)

    x = o_ref[...]                                   # (tile_b, K, D) f32
    tb, K, D = x.shape

    # Per-member vectors, each (K, D); broadcast over the batch-row dim inside ops.
    gr1 = vec_ref[0, 0]
    br1 = vec_ref[0, 1]
    s1 = vec_ref[0, 2]
    b1 = vec_ref[0, 3]
    r2 = vec_ref[0, 4]
    s2 = vec_ref[0, 5]
    b2 = vec_ref[0, 6]

    jw = j if weights_resident else 0
    w1 = w1_ref[jw]                                  # (D, D) bf16
    w2 = w2_ref[jw]

    # ---- LayerNorm over D (one-pass stats; affine folded into gr1/br1) ----
    mean = jnp.mean(x, axis=-1, keepdims=True)
    meansq = jnp.mean(x * x, axis=-1, keepdims=True)
    var = jnp.maximum(meansq - mean * mean, 0.0)
    x_hat = (x - mean) * lax.rsqrt(var + LN_EPS)

    # ---- LinearEfficientEnsemble #1 (LN affine * r1 folded into gr1/br1) ----
    h = x_hat * gr1 + br1                            # (tile_b, K, D)
    # Reshape in f32 (layout-free since K % 8 == 0), then cast for the MXU.
    h2 = h.reshape(tb * K, D).astype(jnp.bfloat16)
    y = lax.dot_general(h2, w1, (((1,), (0,)), ((), ())),
                        preferred_element_type=jnp.float32)
    y = y.reshape(tb, K, D) * s1 + b1

    # ---- ReLU; Dropout is identity in eval/inference mode ----
    # TODO(synk): training-mode dropout would need pltpu.prng_seed / prng_random_bits.
    y = jnp.maximum(y, 0.0)

    # ---- LinearEfficientEnsemble #2 ----
    y = y * r2
    y2 = y.reshape(tb * K, D).astype(jnp.bfloat16)
    z = lax.dot_general(y2, w2, (((1,), (0,)), ((), ())),
                        preferred_element_type=jnp.float32)
    z = z.reshape(tb, K, D) * s2 + b2

    # ---- residual connection (carried in the resident output block across j) ----
    o_ref[...] = x + z


def efficient_resnet_ensemble(x, params, *, tile_b=None):
    """Forward pass. x: (B, K, D) -> (B, K, D)."""
    B, K, D = x.shape
    n_blocks = params["w1"].shape[0]

    if D % 128 != 0:
        raise NotImplementedError("D must be a multiple of 128 (lane-dense tiles).")
    if K % 8 != 0:
        # TODO(synk): support K % 8 != 0 (requires a relayout or a (K, B, D) layout path).
        raise NotImplementedError(
            "K must be a multiple of 8 for the layout-free (tile_b,K,D)->(tile_b*K,D) reshape.")

    if tile_b is None:
        # Cap M = tile_b*K around ~1024 MXU rows; keeps f32 activation blocks small
        # enough for v7x's 64 MiB VMEM. v5e/v6e (128 MiB) tolerate larger tiles.
        target = max(8, 1024 // K)
        if B <= target:
            tile_b = B
        else:
            tile_b = B
            t = (min(target, B) // 8) * 8
            while t >= 8:
                if B % t == 0:
                    tile_b = t
                    break
                t -= 8
    assert B % tile_b == 0, "B must be divisible by tile_b"

    xf = x.astype(jnp.float32)

    # Fold the LayerNorm affine into r1 and pack all per-member vectors into a single
    # (n_blocks, 8, K, D) array: rows 0..6 = gr1, br1, s1, b1, r2, s2, b2; row 7 = pad.
    gr1 = params["ln_g"][:, None, :] * params["r1"]
    br1 = params["ln_b"][:, None, :] * params["r1"]
    vec = jnp.stack(
        [gr1, br1, params["s1"], params["b1"],
         params["r2"], params["s2"], params["b2"], jnp.zeros_like(gr1)],
        axis=1).astype(jnp.float32)                       # (n_blocks, 8, K, D)

    # Weights: (out, in) -> (in, out), bf16 for the MXU.
    w1 = jnp.swapaxes(params["w1"], 1, 2).astype(jnp.bfloat16)
    w2 = jnp.swapaxes(params["w2"], 1, 2).astype(jnp.bfloat16)

    # Keep both weight stacks VMEM-resident when they (plus pipelined activation/vector
    # buffers) fit a conservative budget.  Budget is v7x-safe (64 MiB physical VMEM).
    vmem_limit = 48 * 1024 * 1024
    act_block = tile_b * K * D * 4
    vec_block = 8 * K * D * 4
    w_stack = 2 * n_blocks * D * D * 2                    # w1 + w2, bf16
    weights_resident = (2 * w_stack + 4 * act_block + 2 * vec_block) <= int(0.75 * vmem_limit)

    act_spec = pl.BlockSpec((tile_b, K, D), lambda i, j: (i, 0, 0))
    vec_spec = pl.BlockSpec((1, 8, K, D), lambda i, j: (j, 0, 0, 0))
    if weights_resident:
        # Constant block index -> DMA'd once, never re-fetched across the whole grid.
        w_spec = pl.BlockSpec((n_blocks, D, D), lambda i, j: (0, 0, 0))
    else:
        # Streaming fallback (huge n_blocks*D*D): one weight pair per block step.
        w_spec = pl.BlockSpec((1, D, D), lambda i, j: (j, 0, 0))

    n_tiles = B // tile_b
    N = B * K
    cost = pl.CostEstimate(
        flops=2 * 2 * N * D * D * n_blocks,               # two D x D matmuls per block
        transcendentals=N * n_blocks,                     # rsqrt per row per block
        bytes_accessed=(2 * N * D * 4                     # activations in + out
                        + (1 if weights_resident else n_tiles) * n_blocks * 2 * D * D * 2
                        + n_tiles * n_blocks * 8 * K * D * 4))

    kernel = functools.partial(_resnet_ensemble_kernel,
                               weights_resident=weights_resident)

    out = pl.pallas_call(
        kernel,
        out_shape=jax.ShapeDtypeStruct((B, K, D), jnp.float32),
        grid_spec=pltpu.PrefetchScalarGridSpec(
            num_scalar_prefetch=0,
            grid=(n_tiles, n_blocks),                     # block axis innermost
            in_specs=[act_spec, vec_spec, w_spec, w_spec],
            out_specs=act_spec,
        ),
        compiler_params=pltpu.CompilerParams(
            dimension_semantics=("parallel", "arbitrary"),
            vmem_limit_bytes=vmem_limit),
        cost_estimate=cost,
    )(xf, vec, w1, w2)

    return out.astype(x.dtype)


def init_params(key, d_block, n_blocks, k, *, scaling_init="random-signs"):
    """Init following LinearEfficientEnsemble.reset_parameters / nn.LayerNorm:
      - weight (out, in): U(-1/sqrt(d), 1/sqrt(d))
      - ensemble bias (k, d): one U(-1/sqrt(d), 1/sqrt(d)) (d,) vector copied to all k
      - r, s (k, d): 'ones' (module default) or 'random-signs' (also a valid
        LinearEfficientEnsemble init).  The test uses 'random-signs' so the per-member
        broadcast path is actually exercised; the forward math is identical.
      - LayerNorm: gamma = 1, beta = 0
    """
    bound = d_block ** -0.5

    def uniform(kk, shape):
        return jax.random.uniform(kk, shape, jnp.float32, -bound, bound)

    def scale(kk, shape):
        if scaling_init == "ones":
            return jnp.ones(shape, jnp.float32)
        return jax.random.bernoulli(kk, 0.5, shape).astype(jnp.float32) * 2.0 - 1.0

    keys = jax.random.split(key, n_blocks * 8)
    w1, b1, r1, s1, w2, b2, r2, s2 = [], [], [], [], [], [], [], []
    for n in range(n_blocks):
        kw1, kb1, kr1, ks1, kw2, kb2, kr2, ks2 = keys[8 * n: 8 * n + 8]
        w1.append(uniform(kw1, (d_block, d_block)))                          # (out, in)
        b1.append(jnp.broadcast_to(uniform(kb1, (d_block,)), (k, d_block)))
        r1.append(scale(kr1, (k, d_block)))
        s1.append(scale(ks1, (k, d_block)))
        w2.append(uniform(kw2, (d_block, d_block)))
        b2.append(jnp.broadcast_to(uniform(kb2, (d_block,)), (k, d_block)))
        r2.append(scale(kr2, (k, d_block)))
        s2.append(scale(ks2, (k, d_block)))

    return dict(
        ln_g=jnp.ones((n_blocks, d_block), jnp.float32),
        ln_b=jnp.zeros((n_blocks, d_block), jnp.float32),
        w1=jnp.stack(w1), b1=jnp.stack(b1), r1=jnp.stack(r1), s1=jnp.stack(s1),
        w2=jnp.stack(w2), b2=jnp.stack(b2), r2=jnp.stack(r2), s2=jnp.stack(s2),
    )


def reference(x, params):
    """Pure-JAX reference of the PyTorch forward (eval mode), with the same
    bf16-operand / f32-accumulate matmul numerics as the kernel."""
    h = x.astype(jnp.float32)                             # (B, K, D)
    n_blocks = params["w1"].shape[0]
    for n in range(n_blocks):
        mean = h.mean(-1, keepdims=True)
        var = ((h - mean) ** 2).mean(-1, keepdims=True)   # faithful two-pass LN
        y = (h - mean) / jnp.sqrt(var + LN_EPS)
        y = y * params["ln_g"][n] + params["ln_b"][n]
        y = y * params["r1"][n]                           # (K, D) broadcast over B
        y = jnp.einsum("bkd,od->bko",
                       y.astype(jnp.bfloat16),
                       params["w1"][n].astype(jnp.bfloat16),
                       preferred_element_type=jnp.float32)
        y = y * params["s1"][n] + params["b1"][n]
        y = jnp.maximum(y, 0.0)
        y = y * params["r2"][n]
        y = jnp.einsum("bkd,od->bko",
                       y.astype(jnp.bfloat16),
                       params["w2"][n].astype(jnp.bfloat16),
                       preferred_element_type=jnp.float32)
        y = y * params["s2"][n] + params["b2"][n]
        h = h + y
    return h


if __name__ == "__main__":
    B, K, D, N_BLOCKS = 16, 8, 128, 3

    key = jax.random.PRNGKey(0)
    kx, kp = jax.random.split(key)
    x = jax.random.normal(kx, (B, K, D), dtype=jnp.float32)
    params = init_params(kp, d_block=D, n_blocks=N_BLOCKS, k=K)

    # tile_b=8 -> two batch tiles: exercises the resident residual carry, the resident
    # weight-stack reuse across batch tiles, and an even "parallel" extent.
    out = jax.block_until_ready(efficient_resnet_ensemble(x, params, tile_b=8))
    ref = reference(x, params)

    assert out.shape == (B, K, D)
    max_err = float(jnp.max(jnp.abs(out - ref)))
    # bf16 matmul operands + different f32 reduction orders (MXU vs XLA) and one-pass
    # LN stats mean the kernel is close to, but not bit-identical with, the reference.
    assert jnp.allclose(out, ref, rtol=5e-3, atol=5e-3), max_err

    print("KERNEL_OK")
</pallas_src>

<mosaic_0001>
module attributes {stable_mosaic.version = 11 : i64} {
  func.func @_resnet_ensemble_kernel(%arg0: i32, %arg1: i32, %arg2: memref<8x8x128xf32, #tpu.memory_space<vmem>>, %arg3: memref<1x8x8x128xf32, #tpu.memory_space<vmem>>, %arg4: memref<3x128x128xbf16, #tpu.memory_space<vmem>>, %arg5: memref<3x128x128xbf16, #tpu.memory_space<vmem>>, %arg6: memref<8x8x128xf32, #tpu.memory_space<vmem>>) attributes {dimension_semantics = [#tpu.dimension_semantics<parallel>, #tpu.dimension_semantics<arbitrary>], iteration_bounds = array<i64: 2, 3>, scalar_prefetch = 0 : i64, scratch_operands = 0 : i64, tpu.core_type = #tpu.core_type<tc>, window_params = [{transform_indices = @transform_0, window_bounds = array<i64: 8, 8, 128>}, {transform_indices = @transform_1, window_bounds = array<i64: 1, 8, 8, 128>}, {pipeline_mode = #tpu.pipeline_mode<synchronous>, transform_indices = @transform_2, window_bounds = array<i64: 3, 128, 128>}, {pipeline_mode = #tpu.pipeline_mode<synchronous>, transform_indices = @transform_3, window_bounds = array<i64: 3, 128, 128>}, {transform_indices = @transform_4, window_bounds = array<i64: 8, 8, 128>}]} {
    %c0_i32 = arith.constant 0 : i32
    %0 = arith.cmpi eq, %arg1, %c0_i32 : i32
    %1 = arith.extui %0 : i1 to i32
    %c0_i32_0 = arith.constant 0 : i32
    %2 = arith.cmpi ne, %1, %c0_i32_0 : i32
    scf.if %2 {
      %c0_40 = arith.constant 0 : index
      %c0_41 = arith.constant 0 : index
      %c0_42 = arith.constant 0 : index
      %77 = vector.load %arg2[%c0_40, %c0_41, %c0_42] : memref<8x8x128xf32, #tpu.memory_space<vmem>>, vector<8x8x128xf32>
      %c0_43 = arith.constant 0 : index
      %c0_44 = arith.constant 0 : index
      %c0_45 = arith.constant 0 : index
      %78 = vector.load %arg6[%c0_43, %c0_44, %c0_45] : memref<8x8x128xf32, #tpu.memory_space<vmem>>, vector<8x8x128xf32>
      tpu.vector_store %arg6[%c0_43, %c0_44, %c0_45], %77 {strides = array<i32>} : memref<8x8x128xf32, #tpu.memory_space<vmem>>, vector<8x8x128xf32>,
    } else {
    }
    %c0 = arith.constant 0 : index
    %c0_1 = arith.constant 0 : index
    %c0_2 = arith.constant 0 : index
    %3 = vector.load %arg6[%c0, %c0_1, %c0_2] : memref<8x8x128xf32, #tpu.memory_space<vmem>>, vector<8x8x128xf32>
    %c0_3 = arith.constant 0 : index
    %c0_4 = arith.constant 0 : index
    %c0_5 = arith.constant 0 : index
    %c0_6 = arith.constant 0 : index
    %4 = vector.load %arg3[%c0_3, %c0_4, %c0_5, %c0_6] : memref<1x8x8x128xf32, #tpu.memory_space<vmem>>, vector<1x1x8x128xf32>
    %5 = vector.shape_cast %4 : vector<1x1x8x128xf32> to vector<8x128xf32>
    %c0_7 = arith.constant 0 : index
    %c1 = arith.constant 1 : index
    %c0_8 = arith.constant 0 : index
    %c0_9 = arith.constant 0 : index
    %6 = vector.load %arg3[%c0_7, %c1, %c0_8, %c0_9] : memref<1x8x8x128xf32, #tpu.memory_space<vmem>>, vector<1x1x8x128xf32>
    %7 = vector.shape_cast %6 : vector<1x1x8x128xf32> to vector<8x128xf32>
    %c0_10 = arith.constant 0 : index
    %c2 = arith.constant 2 : index
    %c0_11 = arith.constant 0 : index
    %c0_12 = arith.constant 0 : index
    %8 = vector.load %arg3[%c0_10, %c2, %c0_11, %c0_12] : memref<1x8x8x128xf32, #tpu.memory_space<vmem>>, vector<1x1x8x128xf32>
    %9 = vector.shape_cast %8 : vector<1x1x8x128xf32> to vector<8x128xf32>
    %c0_13 = arith.constant 0 : index
    %c3 = arith.constant 3 : index
    %c0_14 = arith.constant 0 : index
    %c0_15 = arith.constant 0 : index
    %10 = vector.load %arg3[%c0_13, %c3, %c0_14, %c0_15] : memref<1x8x8x128xf32, #tpu.memory_space<vmem>>, vector<1x1x8x128xf32>
    %11 = vector.shape_cast %10 : vector<1x1x8x128xf32> to vector<8x128xf32>
    %c0_16 = arith.constant 0 : index
    %c4 = arith.constant 4 : index
    %c0_17 = arith.constant 0 : index
    %c0_18 = arith.constant 0 : index
    %12 = vector.load %arg3[%c0_16, %c4, %c0_17, %c0_18] : memref<1x8x8x128xf32, #tpu.memory_space<vmem>>, vector<1x1x8x128xf32>
    %13 = vector.shape_cast %12 : vector<1x1x8x128xf32> to vector<8x128xf32>
    %c0_19 = arith.constant 0 : index
    %c5 = arith.constant 5 : index
    %c0_20 = arith.constant 0 : index
    %c0_21 = arith.constant 0 : index
    %14 = vector.load %arg3[%c0_19, %c5, %c0_20, %c0_21] : memref<1x8x8x128xf32, #tpu.memory_space<vmem>>, vector<1x1x8x128xf32>
    %15 = vector.shape_cast %14 : vector<1x1x8x128xf32> to vector<8x128xf32>
    %c0_22 = arith.constant 0 : index
    %c6 = arith.constant 6 : index
    %c0_23 = arith.constant 0 : index
    %c0_24 = arith.constant 0 : index
    %16 = vector.load %arg3[%c0_22, %c6, %c0_23, %c0_24] : memref<1x8x8x128xf32, #tpu.memory_space<vmem>>, vector<1x1x8x128xf32>
    %17 = vector.shape_cast %16 : vector<1x1x8x128xf32> to vector<8x128xf32>
    %18 = arith.index_cast %arg1 : i32 to index
    %c0_25 = arith.constant 0 : index
    %c0_26 = arith.constant 0 : index
    %19 = vector.load %arg4[%18, %c0_25, %c0_26] : memref<3x128x128xbf16, #tpu.memory_space<vmem>>, vector<1x128x128xbf16>
    %20 = vector.shape_cast %19 : vector<1x128x128xbf16> to vector<128x128xbf16>
    %21 = arith.index_cast %arg1 : i32 to index
    %c0_27 = arith.constant 0 : index
    %c0_28 = arith.constant 0 : index
    %22 = vector.load %arg5[%21, %c0_27, %c0_28] : memref<3x128x128xbf16, #tpu.memory_space<vmem>>, vector<1x128x128xbf16>
    %23 = vector.shape_cast %22 : vector<1x128x128xbf16> to vector<128x128xbf16>
    %cst = arith.constant dense<0.000000e+00> : vector<8x8xf32>
    %24 = vector.multi_reduction <add>, %3, %cst [2] : vector<8x8x128xf32> to vector<8x8xf32>
    %25 = vector.shape_cast %24 : vector<8x8xf32> to vector<8x8x1xf32>
    %cst_29 = arith.constant 1.280000e+02 : f32
    %26 = vector.broadcast %cst_29 : f32 to vector<8x8x1xf32>
    %27 = arith.divf %25, %26 : vector<8x8x1xf32>
    %28 = arith.mulf %3, %3 : vector<8x8x128xf32>
    %cst_30 = arith.constant dense<0.000000e+00> : vector<8x8xf32>
    %29 = vector.multi_reduction <add>, %28, %cst_30 [2] : vector<8x8x128xf32> to vector<8x8xf32>
    %30 = vector.shape_cast %29 : vector<8x8xf32> to vector<8x8x1xf32>
    %cst_31 = arith.constant 1.280000e+02 : f32
    %31 = vector.broadcast %cst_31 : f32 to vector<8x8x1xf32>
    %32 = arith.divf %30, %31 : vector<8x8x1xf32>
    %33 = arith.mulf %27, %27 : vector<8x8x1xf32>
    %34 = arith.subf %32, %33 : vector<8x8x1xf32>
    %cst_32 = arith.constant 0.000000e+00 : f32
    %35 = vector.broadcast %cst_32 : f32 to vector<8x8x1xf32>
    %36 = arith.maximumf %34, %35 : vector<8x8x1xf32>
    %37 = vector.broadcast %27 : vector<8x8x1xf32> to vector<8x8x128xf32>
    %38 = arith.subf %3, %37 : vector<8x8x128xf32>
    %cst_33 = arith.constant 9.99999974E-6 : f32
    %39 = vector.broadcast %cst_33 : f32 to vector<8x8x1xf32>
    %40 = arith.addf %36, %39 : vector<8x8x1xf32>
    %41 = math.rsqrt %40 : vector<8x8x1xf32>
    %42 = vector.broadcast %41 : vector<8x8x1xf32> to vector<8x8x128xf32>
    %43 = arith.mulf %38, %42 : vector<8x8x128xf32>
    %44 = vector.shape_cast %5 : vector<8x128xf32> to vector<1x8x128xf32>
    %45 = vector.broadcast %44 : vector<1x8x128xf32> to vector<8x8x128xf32>
    %46 = arith.mulf %43, %45 : vector<8x8x128xf32>
    %47 = vector.shape_cast %7 : vector<8x128xf32> to vector<1x8x128xf32>
    %48 = vector.broadcast %47 : vector<1x8x128xf32> to vector<8x8x128xf32>
    %49 = arith.addf %46, %48 : vector<8x8x128xf32>
    %50 = vector.shape_cast %49 : vector<8x8x128xf32> to vector<64x128xf32>
    %51 = arith.truncf %50 : vector<64x128xf32> to vector<64x128xbf16>
    %cst_34 = arith.constant dense<0.000000e+00> : vector<64x128xf32>
    %52 = tpu.matmul %51, %20, %cst_34 {dimension_numbers = #tpu.dot_dimension_numbers<[1], [0], [0], [1], [0, 0, 1, 1], [], []>} : vector<64x128xbf16>, vector<128x128xbf16>, vector<64x128xf32> -> vector<64x128xf32>
    %53 = vector.shape_cast %52 : vector<64x128xf32> to vector<8x8x128xf32>
    %54 = vector.shape_cast %9 : vector<8x128xf32> to vector<1x8x128xf32>
    %55 = vector.broadcast %54 : vector<1x8x128xf32> to vector<8x8x128xf32>
    %56 = arith.mulf %53, %55 : vector<8x8x128xf32>
    %57 = vector.shape_cast %11 : vector<8x128xf32> to vector<1x8x128xf32>
    %58 = vector.broadcast %57 : vector<1x8x128xf32> to vector<8x8x128xf32>
    %59 = arith.addf %56, %58 : vector<8x8x128xf32>
    %cst_35 = arith.constant 0.000000e+00 : f32
    %60 = vector.broadcast %cst_35 : f32 to vector<8x8x128xf32>
    %61 = arith.maximumf %59, %60 : vector<8x8x128xf32>
    %62 = vector.shape_cast %13 : vector<8x128xf32> to vector<1x8x128xf32>
    %63 = vector.broadcast %62 : vector<1x8x128xf32> to vector<8x8x128xf32>
    %64 = arith.mulf %61, %63 : vector<8x8x128xf32>
    %65 = vector.shape_cast %64 : vector<8x8x128xf32> to vector<64x128xf32>
    %66 = arith.truncf %65 : vector<64x128xf32> to vector<64x128xbf16>
    %cst_36 = arith.constant dense<0.000000e+00> : vector<64x128xf32>
    %67 = tpu.matmul %66, %23, %cst_36 {dimension_numbers = #tpu.dot_dimension_numbers<[1], [0], [0], [1], [0, 0, 1, 1], [], []>} : vector<64x128xbf16>, vector<128x128xbf16>, vector<64x128xf32> -> vector<64x128xf32>
    %68 = vector.shape_cast %67 : vector<64x128xf32> to vector<8x8x128xf32>
    %69 = vector.shape_cast %15 : vector<8x128xf32> to vector<1x8x128xf32>
    %70 = vector.broadcast %69 : vector<1x8x128xf32> to vector<8x8x128xf32>
    %71 = arith.mulf %68, %70 : vector<8x8x128xf32>
    %72 = vector.shape_cast %17 : vector<8x128xf32> to vector<1x8x128xf32>
    %73 = vector.broadcast %72 : vector<1x8x128xf32> to vector<8x8x128xf32>
    %74 = arith.addf %71, %73 : vector<8x8x128xf32>
    %75 = arith.addf %3, %74 : vector<8x8x128xf32>
    %c0_37 = arith.constant 0 : index
    %c0_38 = arith.constant 0 : index
    %c0_39 = arith.constant 0 : index
    %76 = vector.load %arg6[%c0_37, %c0_38, %c0_39] : memref<8x8x128xf32, #tpu.memory_space<vmem>>, vector<8x8x128xf32>
    tpu.vector_store %arg6[%c0_37, %c0_38, %c0_39], %75 {strides = array<i32>} : memref<8x8x128xf32, #tpu.memory_space<vmem>>, vector<8x8x128xf32>,
    return
  }
  func.func @transform_0(%arg0: i32, %arg1: i32) -> (i32, i32, i32) {
    %c0_i32 = arith.constant 0 : i32
    %c0_i32_0 = arith.constant 0 : i32
    %c0_i32_1 = arith.constant 0 : i32
    return %arg0, %c0_i32, %c0_i32_0 : i32, i32, i32
  }
  func.func @transform_1(%arg0: i32, %arg1: i32) -> (i32, i32, i32, i32) {
    %c0_i32 = arith.constant 0 : i32
    %c0_i32_0 = arith.constant 0 : i32
    %c0_i32_1 = arith.constant 0 : i32
    %c0_i32_2 = arith.constant 0 : i32
    return %arg1, %c0_i32, %c0_i32_0, %c0_i32_1 : i32, i32, i32, i32
  }
  func.func @transform_2(%arg0: i32, %arg1: i32) -> (i32, i32, i32) {
    %c0_i32 = arith.constant 0 : i32
    %c0_i32_0 = arith.constant 0 : i32
    %c0_i32_1 = arith.constant 0 : i32
    %c0_i32_2 = arith.constant 0 : i32
    return %c0_i32, %c0_i32_0, %c0_i32_1 : i32, i32, i32
  }
  func.func @transform_3(%arg0: i32, %arg1: i32) -> (i32, i32, i32) {
    %c0_i32 = arith.constant 0 : i32
    %c0_i32_0 = arith.constant 0 : i32
    %c0_i32_1 = arith.constant 0 : i32
    %c0_i32_2 = arith.constant 0 : i32
    return %c0_i32, %c0_i32_0, %c0_i32_1 : i32, i32, i32
  }
  func.func @transform_4(%arg0: i32, %arg1: i32) -> (i32, i32, i32) {
    %c0_i32 = arith.constant 0 : i32
    %c0_i32_0 = arith.constant 0 : i32
    %c0_i32_1 = arith.constant 0 : i32
    return %arg0, %c0_i32, %c0_i32_0 : i32, i32, i32
  }
}

</mosaic_0001>

<llo_original>
// kernel: tpu_custom_call.1
$region0: #{tpu_custom_call.1}
  #allocation0 [shape = 'u32[]', space=smem, size = 0x4, offset = 0x4, fixed_abs, tag = 'smem constant byte address 0x4 - core index']
  #allocation1 [shape = 'u32[144,128]{1,0:T(1,128)}', space=vmem, size = 0x12000, scoped, tag = 'internal scratch']
  %s0 = inlined_call_operand.hbm [shape: f32[16,8,128], index: 0, kind: input, shape index: {}]
  %s1 = inlined_call_operand.hbm [shape: f32[3,8,8,128], index: 1, kind: input, shape index: {}]
  %s2 = inlined_call_operand.hbm [shape: bf16[3,128,128], index: 2, kind: input, shape index: {}]
  %s3 = inlined_call_operand.hbm [shape: bf16[3,128,128], index: 3, kind: input, shape index: {}]
  %s4 = inlined_call_operand.hbm [shape: f32[16,8,128], index: 4, kind: output, shape index: {}]
  %s5 = sld [smem:[#allocation0]]
  $region69: #{tpu_custom_call.1} parent=0
    _
  %s7 = ssub.s32 1, %s5
  %s8 = scalar_select 0, %s7, %s5
  $region1: #{tpu_custom_call.1} parent=0
    #allocation2 [shape = 'u8[65536]{0}', space=vmem, size = 0x10000, scoped, tag = 'input window, operand 0']
    #allocation3 [shape = 's32[2]{0}', space=sflag, size = 0x8, scoped, tag = 'scoped memory for tpu_custom_call.1']
    #allocation4 [shape = 's32[2]{0}', space=sflag, size = 0x8, scoped, tag = 'scoped memory for tpu_custom_call.1']
    #allocation5 [shape = 'u8[65536]{0}', space=vmem, size = 0x10000, scoped, tag = 'input window, operand 1']
    #allocation6 [shape = 's32[2]{0}', space=sflag, size = 0x8, scoped, tag = 'scoped memory for tpu_custom_call.1']
    #allocation7 [shape = 'u8[98304]{0}', space=vmem, size = 0x18000, scoped, tag = 'input window, operand 2, single buffered']
    #allocation8 [shape = 'u8[98304]{0}', space=vmem, size = 0x18000, scoped, tag = 'input window, operand 3, single buffered']
    #allocation9 [shape = 's32[1]{0}', space=sflag, size = 0x4, scoped, tag = 'scoped memory for tpu_custom_call.1']
    #allocation10 [shape = 'u8[65536]{0}', space=vmem, size = 0x10000, scoped, tag = 'output window, operand 0']
    %9 = vsyncpa [#allocation3], 0
    %s10 = scalar_lea.sflag [#allocation3], 1
    %11 = vsyncpa %s10, 0
    %12 = vsyncpa [#allocation6], 0
    %s13 = scalar_lea.sflag [#allocation6], 1
    %14 = vsyncpa %s13, 0
    %15 = vsyncpa [#allocation9], 0
    %16 = vsyncpa [#allocation4], 0
    %s17 = scalar_lea.sflag [#allocation4], 1
    %18 = vsyncpa %s17, 0
    loop: start=0, step=1, limit=8
    $region2: #{tpu_custom_call.1} parent=1 // loop_pre_header
      _
    $region3: #{tpu_custom_call.1} parent=1 // loop_header
      %s20 = sphi 0, %s24
      %p21 = scmp.ge.s32.totalorder %s20, 8
      %s27 = sphi 0, %s39
      %s28 = sphi 0, %s35
      %s29 = sphi 0, %s27
      %s30 = sphi 0, %s28
      %s31 = sphi 0, %s29
      %s32 = sphi 0, %s30
      %s42 = sphi 0, %s44
      %s45 = sphi 0, %s42
      %s46 = sphi 0, %s45
      %s62 = sphi 0, %s46
      %s68 = sphi 0, %s70
      %s71 = sphi 0, %s68
      %s72 = sphi 0, %s71
      %s88 = sphi 0, %s72
      %s92 = sphi 0, %s92
      %s94 = sphi 0, %s92
      %s95 = sphi 0, %s94
      %s109 = sphi 0, %s95
      %s113 = sphi 0, %s113
      %s115 = sphi 0, %s113
      %s116 = sphi 0, %s115
      %s130 = sphi 0, %s116
      %s136 = sphi 0, %s138
      %s139 = sphi 0, %s136
      %s140 = sphi 0, %s139
      %s156 = sphi 0, %s140
    $region4: #{tpu_custom_call.1} parent=1 // loop_header_branch
      %23 = sbr.rel (%p21) target = $region8
    $region5: #{tpu_custom_call.1} parent=1 // loop_body
      %s25 = ssub.s32 %s20, 1
      %s26 = ssub.s32 %s20, 2
      %s33 = sadd.s32 1, %s28
      %p34 = scmp.ge.s32.totalorder %s33, 3
      %s35 = scalar_select %p34, 0, %s33
      %s36 = sadd.s32 1, %s27
      %s37 = scalar_select %p34, %s36, %s27
      %p38 = scmp.ge.s32.totalorder %s37, 2
      %s39 = scalar_select %p38, 0, %s37
      %s40 = ssub.s32 %s27, %s39
      %p41 = scmp.eq.s32.totalorder %s40, 0
      %s43 = sadd.s32 %s42, 1
      %s44 = scalar_select %p41, %s42, %s43
      %p47 = pneg %p41
      %p48 = scmp.eq.s32.totalorder %s20, 5
      %p49 = por %p47, %p48
      %p50 = scmp.ne.s32.totalorder %s42, %s45
      %p51 = scmp.eq.s32.totalorder %s20, 0
      %p52 = por %p50, %p51
      %p53 = scmp.ne.s32.totalorder %s42, %s45
      %p54 = scmp.eq.s32.totalorder %s25, 5
      %p55 = por %p53, %p54
      %p56 = scmp.ne.s32.totalorder %s45, %s46
      %p57 = scmp.eq.s32.totalorder %s25, 0
      %p58 = por %p56, %p57
      %p59 = scmp.ne.s32.totalorder %s45, %s46
      %p60 = scmp.eq.s32.totalorder %s26, 5
      %p61 = por %p59, %p60
      %p63 = scmp.ne.s32.totalorder %s46, %s62
      %p64 = scmp.eq.s32.totalorder %s26, 0
      %p65 = por %p63, %p64
      %s66 = ssub.s32 %s28, %s35
      %p67 = scmp.eq.s32.totalorder %s66, 0
      %s69 = sadd.s32 %s68, 1
      %s70 = scalar_select %p67, %s68, %s69
      %p73 = pneg %p67
      %p74 = scmp.eq.s32.totalorder %s20, 5
      %p75 = por %p73, %p74
      %p76 = scmp.ne.s32.totalorder %s68, %s71
      %p77 = scmp.eq.s32.totalorder %s20, 0
      %p78 = por %p76, %p77
      %p79 = scmp.ne.s32.totalorder %s68, %s71
      %p80 = scmp.eq.s32.totalorder %s25, 5
      %p81 = por %p79, %p80
      %p82 = scmp.ne.s32.totalorder %s71, %s72
      %p83 = scmp.eq.s32.totalorder %s25, 0
      %p84 = por %p82, %p83
      %p85 = scmp.ne.s32.totalorder %s71, %s72
      %p86 = scmp.eq.s32.totalorder %s26, 5
      %p87 = por %p85, %p86
      %p89 = scmp.ne.s32.totalorder %s72, %s88
      %p90 = scmp.eq.s32.totalorder %s26, 0
      %p91 = por %p89, %p90
      %s93 = sadd.s32 %s92, 1
      %p96 = scmp.eq.s32.totalorder %s20, 5
      %p97 = scmp.ne.s32.totalorder %s92, %s94
      %p98 = scmp.eq.s32.totalorder %s20, 0
      %p99 = por %p97, %p98
      %p100 = scmp.ne.s32.totalorder %s92, %s94
      %p101 = scmp.eq.s32.totalorder %s25, 5
      %p102 = por %p100, %p101
      %p103 = scmp.ne.s32.totalorder %s94, %s95
      %p104 = scmp.eq.s32.totalorder %s25, 0
      %p105 = por %p103, %p104
      %p106 = scmp.ne.s32.totalorder %s94, %s95
      %p107 = scmp.eq.s32.totalorder %s26, 5
      %p108 = por %p106, %p107
      %p110 = scmp.ne.s32.totalorder %s95, %s109
      %p111 = scmp.eq.s32.totalorder %s26, 0
      %p112 = por %p110, %p111
      %s114 = sadd.s32 %s113, 1
      %p117 = scmp.eq.s32.totalorder %s20, 5
      %p118 = scmp.ne.s32.totalorder %s113, %s115
      %p119 = scmp.eq.s32.totalorder %s20, 0
      %p120 = por %p118, %p119
      %p121 = scmp.ne.s32.totalorder %s113, %s115
      %p122 = scmp.eq.s32.totalorder %s25, 5
      %p123 = por %p121, %p122
      %p124 = scmp.ne.s32.totalorder %s115, %s116
      %p125 = scmp.eq.s32.totalorder %s25, 0
      %p126 = por %p124, %p125
      %p127 = scmp.ne.s32.totalorder %s115, %s116
      %p128 = scmp.eq.s32.totalorder %s26, 5
      %p129 = por %p127, %p128
      %p131 = scmp.ne.s32.totalorder %s116, %s130
      %p132 = scmp.eq.s32.totalorder %s26, 0
      %p133 = por %p131, %p132
      %s134 = ssub.s32 %s27, %s39
      %p135 = scmp.eq.s32.totalorder %s134, 0
      %s137 = sadd.s32 %s136, 1
      %s138 = scalar_select %p135, %s136, %s137
      %p141 = pneg %p135
      %p142 = scmp.eq.s32.totalorder %s20, 5
      %p143 = por %p141, %p142
      %p144 = scmp.ne.s32.totalorder %s136, %s139
      %p145 = scmp.eq.s32.totalorder %s20, 0
      %p146 = por %p144, %p145
      %p147 = scmp.ne.s32.totalorder %s136, %s139
      %p148 = scmp.eq.s32.totalorder %s25, 5
      %p149 = por %p147, %p148
      %p150 = scmp.ne.s32.totalorder %s139, %s140
      %p151 = scmp.eq.s32.totalorder %s25, 0
      %p152 = por %p150, %p151
      %p153 = scmp.ne.s32.totalorder %s139, %s140
      %p154 = scmp.eq.s32.totalorder %s26, 5
      %p155 = por %p153, %p154
      %p157 = scmp.ne.s32.totalorder %s140, %s156
      %p158 = scmp.eq.s32.totalorder %s26, 0
      %p159 = por %p157, %p158
      %p160 = scmp.le.s32.totalorder 1, %s20
      %p161 = scmp.lt.s32.totalorder %s20, 7
      %p162 = pnand %p160, %p161
      %p163 = pneg %p162
      // Predicated region
      $region9: #{tpu_custom_call.1} parent=5 // pred_check
        _
      $region10: #{tpu_custom_call.1} parent=5 // pred_check_branch
        %165 = sbr.rel (%p162) target = $region12
      $region11: #{tpu_custom_call.1} parent=5 // pred_region
        %s166 = ssub.s32 %s20, 1
        // Predicated region
        $region13: #{tpu_custom_call.1} parent=11 // pred_check
          %p167 = pneg %p105
        $region14: #{tpu_custom_call.1} parent=11 // pred_check_branch
          %169 = sbr.rel (%p167) target = $region16
        $region15: #{tpu_custom_call.1} parent=11 // pred_region
          %s171 = ssub.s32 3072, 3072
          %172 = vsyncadd [#allocation6], %s171
          %s173 = sshll.u32 [#allocation7], 4
          %s174 = int_to_ptr.vmem [resolvable:$true] %s173
          %179 = dma.hbm_to_vmem [thread:$0]  %s2, 3072, %s174, [#allocation6], 64, 64, 4
        $region16: #{tpu_custom_call.1} parent=11 // pred_fallthru
          _
        // Predicated region
        $region17: #{tpu_custom_call.1} parent=11 // pred_check
          %p180 = pneg %p126
        $region18: #{tpu_custom_call.1} parent=11 // pred_check_branch
          %182 = sbr.rel (%p180) target = $region20
        $region19: #{tpu_custom_call.1} parent=11 // pred_region
          %s184 = ssub.s32 3072, 3072
          %185 = vsyncadd [#allocation9], %s184
          %s186 = sshll.u32 [#allocation8], 4
          %s187 = int_to_ptr.vmem [resolvable:$true] %s186
          %192 = dma.hbm_to_vmem [thread:$0]  %s3, 3072, %s187, [#allocation9], 64, 64, 4
        $region20: #{tpu_custom_call.1} parent=11 // pred_fallthru
          _
      $region12: #{tpu_custom_call.1} parent=5 // pred_fallthru
        _
      %p193 = scmp.lt.s32.totalorder %s20, 6
      // Predicated region
      $region21: #{tpu_custom_call.1} parent=5 // pred_check
        %p194 = pneg %p193
      $region22: #{tpu_custom_call.1} parent=5 // pred_check_branch
        %196 = sbr.rel (%p194) target = $region24
      $region23: #{tpu_custom_call.1} parent=5 // pred_region
        // Predicated region
        $region25: #{tpu_custom_call.1} parent=23 // pred_check
          %p197 = pneg %p52
        $region26: #{tpu_custom_call.1} parent=23 // pred_check_branch
          %199 = sbr.rel (%p197) target = $region28
        $region27: #{tpu_custom_call.1} parent=23 // pred_region
          %s200 = sand.u32 %s42, 1
          %s201 = scalar_lea.sflag [#allocation3], %s200
          %s202 = sand.u32 %s42, 1
          %s203 = smul.addr %s202, 64
          %s204 = scalar_lea.vmem [#allocation2], %s203
          %s205 = smul.u32 8, %s27
          %s207 = ssub.s32 1024, 1024
          %208 = vsyncadd %s201, %s207
          %s209 = smul.addr %s205, 128
          %s210 = scalar_lea.hbm %s0, %s209
          %s211 = sshll.u32 %s204, 4
          %s212 = int_to_ptr.vmem [resolvable:$true] %s211
          %217 = dma.hbm_to_vmem [thread:$0]  %s210, 1024, %s212, %s201, 128, 128, 8
        $region28: #{tpu_custom_call.1} parent=23 // pred_fallthru
          _
        // Predicated region
        $region29: #{tpu_custom_call.1} parent=23 // pred_check
          %p218 = pneg %p78
        $region30: #{tpu_custom_call.1} parent=23 // pred_check_branch
          %220 = sbr.rel (%p218) target = $region32
        $region31: #{tpu_custom_call.1} parent=23 // pred_region
          %s221 = sand.u32 %s20, 1
          %s222 = scalar_lea.sflag [#allocation6], %s221
          %s223 = sand.u32 %s68, 1
          %s224 = smul.addr %s223, 64
          %s225 = scalar_lea.vmem [#allocation5], %s224
          %s227 = ssub.s32 1024, 1024
          %228 = vsyncadd %s222, %s227
          %s229 = smul.addr %s28, 8
          %s230 = smul.addr %s229, 128
          %s231 = scalar_lea.hbm %s1, %s230
          %s232 = sshll.u32 %s225, 4
          %s233 = int_to_ptr.vmem [resolvable:$true] %s232
          %238 = dma.hbm_to_vmem [thread:$0]  %s231, 1024, %s233, %s222, 128, 128, 8
        $region32: #{tpu_custom_call.1} parent=23 // pred_fallthru
          _
      $region24: #{tpu_custom_call.1} parent=5 // pred_fallthru
        _
      %p239 = scmp.le.s32.totalorder 1, %s20
      %p240 = scmp.lt.s32.totalorder %s20, 7
      %p241 = pnand %p239, %p240
      %p242 = pneg %p241
      // Predicated region
      $region33: #{tpu_custom_call.1} parent=5 // pred_check
        _
      $region34: #{tpu_custom_call.1} parent=5 // pred_check_branch
        %244 = sbr.rel (%p241) target = $region36
      $region35: #{tpu_custom_call.1} parent=5 // pred_region
        %s245 = ssub.s32 %s20, 1
        %s246 = sand.u32 %s45, 1
        %s247 = scalar_lea.sflag [#allocation3], %s246
        %s248 = sand.u32 %s45, 1
        %s249 = smul.addr %s248, 64
        %s250 = scalar_lea.vmem [#allocation2], %s249
        // Predicated region
        $region37: #{tpu_custom_call.1} parent=35 // pred_check
          %p251 = pneg %p58
        $region38: #{tpu_custom_call.1} parent=35 // pred_check_branch
          %253 = sbr.rel (%p251) target = $region40
        $region39: #{tpu_custom_call.1} parent=35 // pred_region
          %254 = dma.done %s247, 1024
        $region40: #{tpu_custom_call.1} parent=35 // pred_fallthru
          _
        %s255 = sand.u32 %s25, 1
        %s256 = scalar_lea.sflag [#allocation6], %s255
        %s257 = sand.u32 %s71, 1
        %s258 = smul.addr %s257, 64
        %s259 = scalar_lea.vmem [#allocation5], %s258
        // Predicated region
        $region41: #{tpu_custom_call.1} parent=35 // pred_check
          %p260 = pneg %p84
        $region42: #{tpu_custom_call.1} parent=35 // pred_check_branch
          %262 = sbr.rel (%p260) target = $region44
        $region43: #{tpu_custom_call.1} parent=35 // pred_region
          %263 = dma.done %s256, 1024
        $region44: #{tpu_custom_call.1} parent=35 // pred_fallthru
          _
        // Predicated region
        $region45: #{tpu_custom_call.1} parent=35 // pred_check
          %p264 = pneg %p105
        $region46: #{tpu_custom_call.1} parent=35 // pred_check_branch
          %266 = sbr.rel (%p264) target = $region48
        $region47: #{tpu_custom_call.1} parent=35 // pred_region
          %267 = dma.done [#allocation6], 3072
        $region48: #{tpu_custom_call.1} parent=35 // pred_fallthru
          _
        // Predicated region
        $region49: #{tpu_custom_call.1} parent=35 // pred_check
          %p268 = pneg %p126
        $region50: #{tpu_custom_call.1} parent=35 // pred_check_branch
          %270 = sbr.rel (%p268) target = $region52
        $region51: #{tpu_custom_call.1} parent=35 // pred_region
          %271 = dma.done [#allocation9], 3072
        $region52: #{tpu_custom_call.1} parent=35 // pred_fallthru
          _
        %s272 = sand.u32 %s45, 1
        %s273 = scalar_lea.sflag [#allocation3], %s272
        %s274 = sand.u32 %s45, 1
        %s275 = smul.addr %s274, 64
        %s276 = scalar_lea.vmem [#allocation2], %s275
        %p277 = pneg %p58
        %p278 = pneg %p55
        %s279 = sand.u32 %s25, 1
        %s280 = scalar_lea.sflag [#allocation6], %s279
        %s281 = sand.u32 %s71, 1
        %s282 = smul.addr %s281, 64
        %s283 = scalar_lea.vmem [#allocation5], %s282
        %p284 = pneg %p84
        %p285 = pneg %p81
        %p286 = pneg %p105
        %p287 = pneg %p102
        %p288 = pneg %p126
        %p289 = pneg %p123
        %p290 = pneg %p152
        %p291 = pneg %p149
        %s292 = sand.u32 %s139, 1
        %s293 = scalar_lea.sflag [#allocation4], %s292
        %s294 = sand.u32 %s139, 1
        %s295 = smul.addr %s294, 64
        %s296 = scalar_lea.vmem [#allocation10], %s295
        %s297 = smul.u32 8, %s29
        %s298 = smul.u32 8, %s29
        %p300 = scmp.eq.s32.totalorder %s30, 0
        // Predicated region
        $region53: #{tpu_custom_call.1} parent=35 // pred_check
          %p301 = pneg %p300
        $region54: #{tpu_custom_call.1} parent=35 // pred_check_branch
          %303 = sbr.rel (%p301) target = $region56
        $region55: #{tpu_custom_call.1} parent=35 // pred_region
          %v304 = vld [vmem:[%s250] sm:$0xff]
          %v305 = vld [vmem:[%s250 + $0x8] sm:$0xff]
          %v306 = vld [vmem:[%s250 + $0x10] sm:$0xff]
          %v307 = vld [vmem:[%s250 + $0x18] sm:$0xff]
          %v308 = vld [vmem:[%s250 + $0x20] sm:$0xff]
          %v309 = vld [vmem:[%s250 + $0x28] sm:$0xff]
          %v310 = vld [vmem:[%s250 + $0x30] sm:$0xff]
          %v311 = vld [vmem:[%s250 + $0x38] sm:$0xff]
          %312 = vst [vmem:[%s296] sm:$0xff] %v304
          %313 = vst [vmem:[%s296 + $0x8] sm:$0xff] %v305
          %314 = vst [vmem:[%s296 + $0x10] sm:$0xff] %v306
          %315 = vst [vmem:[%s296 + $0x18] sm:$0xff] %v307
          %316 = vst [vmem:[%s296 + $0x20] sm:$0xff] %v308
          %317 = vst [vmem:[%s296 + $0x28] sm:$0xff] %v309
          %318 = vst [vmem:[%s296 + $0x30] sm:$0xff] %v310
          %319 = vst [vmem:[%s296 + $0x38] sm:$0xff] %v311
        $region56: #{tpu_custom_call.1} parent=35 // pred_fallthru
          _
        %v320 = vld [vmem:[%s296] sm:$0xff]
        %v321 = vld [vmem:[%s296 + $0x8] sm:$0xff]
        %v322 = vld [vmem:[%s296 + $0x10] sm:$0xff]
        %v323 = vld [vmem:[%s296 + $0x18] sm:$0xff]
        %v324 = vld [vmem:[%s296 + $0x20] sm:$0xff]
        %v325 = vld [vmem:[%s296 + $0x28] sm:$0xff]
        %v326 = vld [vmem:[%s296 + $0x30] sm:$0xff]
        %v327 = vld [vmem:[%s296 + $0x38] sm:$0xff]
        %v328 = vld [vmem:[%s259] sm:$0xff]
        %s329 = scalar_lea.vmem %s259, 8 [#allocation5]
        %v330 = vld [vmem:[%s329] sm:$0xff]
        %s331 = scalar_lea.vmem %s259, 16 [#allocation5]
        %v332 = vld [vmem:[%s331] sm:$0xff]
        %s333 = scalar_lea.vmem %s259, 24 [#allocation5]
        %v334 = vld [vmem:[%s333] sm:$0xff]
        %s335 = scalar_lea.vmem %s259, 32 [#allocation5]
        %v336 = vld [vmem:[%s335] sm:$0xff]
        %s337 = scalar_lea.vmem %s259, 40 [#allocation5]
        %v338 = vld [vmem:[%s337] sm:$0xff]
        %s339 = scalar_lea.vmem %s259, 48 [#allocation5]
        %v340 = vld [vmem:[%s339] sm:$0xff]
        %s341 = smul.u32 %s30, 16
        %s342 = smul.addr %s341, 4
        %s343 = scalar_lea.vmem [#allocation7], %s342
        %v344 = vld [vmem:[%s343] sm:$0xf]
        %v345 = vld [vmem:[%s343 + $0x4] sm:$0xf]
        %v346 = vld [vmem:[%s343 + $0x8] sm:$0xf]
        %v347 = vld [vmem:[%s343 + $0xc] sm:$0xf]
        %v348 = vld [vmem:[%s343 + $0x10] sm:$0xf]
        %v349 = vld [vmem:[%s343 + $0x14] sm:$0xf]
        %v350 = vld [vmem:[%s343 + $0x18] sm:$0xf]
        %v351 = vld [vmem:[%s343 + $0x1c] sm:$0xf]
        %v352 = vld [vmem:[%s343 + $0x20] sm:$0xf]
        %v353 = vld [vmem:[%s343 + $0x24] sm:$0xf]
        %v354 = vld [vmem:[%s343 + $0x28] sm:$0xf]
        %v355 = vld [vmem:[%s343 + $0x2c] sm:$0xf]
        %v356 = vld [vmem:[%s343 + $0x30] sm:$0xf]
        %v357 = vld [vmem:[%s343 + $0x34] sm:$0xf]
        %v358 = vld [vmem:[%s343 + $0x38] sm:$0xf]
        %v359 = vld [vmem:[%s343 + $0x3c] sm:$0xf]
        %s360 = smul.addr %s341, 4
        %s361 = scalar_lea.vmem [#allocation8], %s360
        %v362 = vld [vmem:[%s361] sm:$0xf]
        %v363 = vld [vmem:[%s361 + $0x4] sm:$0xf]
        %v364 = vld [vmem:[%s361 + $0x8] sm:$0xf]
        %v365 = vld [vmem:[%s361 + $0xc] sm:$0xf]
        %v366 = vld [vmem:[%s361 + $0x10] sm:$0xf]
        %v367 = vld [vmem:[%s361 + $0x14] sm:$0xf]
        %v368 = vld [vmem:[%s361 + $0x18] sm:$0xf]
        %v369 = vld [vmem:[%s361 + $0x1c] sm:$0xf]
        %v370 = vld [vmem:[%s361 + $0x20] sm:$0xf]
        %v371 = vld [vmem:[%s361 + $0x24] sm:$0xf]
        %v372 = vld [vmem:[%s361 + $0x28] sm:$0xf]
        %v373 = vld [vmem:[%s361 + $0x2c] sm:$0xf]
        %v374 = vld [vmem:[%s361 + $0x30] sm:$0xf]
        %v375 = vld [vmem:[%s361 + $0x34] sm:$0xf]
        %v376 = vld [vmem:[%s361 + $0x38] sm:$0xf]
        %v377 = vld [vmem:[%s361 + $0x3c] sm:$0xf]
        %378 = vadd.xlane.f32.xlu0 %v320
        %v379 = vpop.xlane.xlu0 %378
        %380 = vadd.xlane.f32.xlu0 %v321
        %v381 = vpop.xlane.xlu0 %380
        %382 = vadd.xlane.f32.xlu0 %v322
        %v383 = vpop.xlane.xlu0 %382
        %384 = vadd.xlane.f32.xlu0 %v323
        %v385 = vpop.xlane.xlu0 %384
        %386 = vadd.xlane.f32.xlu0 %v324
        %v387 = vpop.xlane.xlu0 %386
        %388 = vadd.xlane.f32.xlu0 %v325
        %v389 = vpop.xlane.xlu0 %388
        %390 = vadd.xlane.f32.xlu0 %v326
        %v391 = vpop.xlane.xlu0 %390
        %392 = vadd.xlane.f32.xlu0 %v327
        %v393 = vpop.xlane.xlu0 %392
        %v394 = vrcp.pop 128.0
        %v395 = vmul.f32 %v379, %v394
        %v396 = vmul.f32 %v381, %v394
        %v397 = vmul.f32 %v383, %v394
        %v398 = vmul.f32 %v385, %v394
        %v399 = vmul.f32 %v387, %v394
        %v400 = vmul.f32 %v389, %v394
        %v401 = vmul.f32 %v391, %v394
        %v402 = vmul.f32 %v393, %v394
        %v403 = vmul.f32 %v320, %v320
        %v404 = vmul.f32 %v321, %v321
        %v405 = vmul.f32 %v322, %v322
        %v406 = vmul.f32 %v323, %v323
        %v407 = vmul.f32 %v324, %v324
        %v408 = vmul.f32 %v325, %v325
        %v409 = vmul.f32 %v326, %v326
        %v410 = vmul.f32 %v327, %v327
        %411 = vadd.xlane.f32.xlu0 %v403
        %v412 = vpop.xlane.xlu0 %411
        %413 = vadd.xlane.f32.xlu0 %v404
        %v414 = vpop.xlane.xlu0 %413
        %415 = vadd.xlane.f32.xlu0 %v405
        %v416 = vpop.xlane.xlu0 %415
        %417 = vadd.xlane.f32.xlu0 %v406
        %v418 = vpop.xlane.xlu0 %417
        %419 = vadd.xlane.f32.xlu0 %v407
        %v420 = vpop.xlane.xlu0 %419
        %421 = vadd.xlane.f32.xlu0 %v408
        %v422 = vpop.xlane.xlu0 %421
        %423 = vadd.xlane.f32.xlu0 %v409
        %v424 = vpop.xlane.xlu0 %423
        %425 = vadd.xlane.f32.xlu0 %v410
        %v426 = vpop.xlane.xlu0 %425
        %v427 = vmul.f32 %v412, %v394
        %v428 = vmul.f32 %v414, %v394
        %v429 = vmul.f32 %v416, %v394
        %v430 = vmul.f32 %v418, %v394
        %v431 = vmul.f32 %v420, %v394
        %v432 = vmul.f32 %v422, %v394
        %v433 = vmul.f32 %v424, %v394
        %v434 = vmul.f32 %v426, %v394
        %v435 = vmul.f32 %v395, %v395
        %v436 = vmul.f32 %v396, %v396
        %v437 = vmul.f32 %v397, %v397
        %v438 = vmul.f32 %v398, %v398
        %v439 = vmul.f32 %v399, %v399
        %v440 = vmul.f32 %v400, %v400
        %v441 = vmul.f32 %v401, %v401
        %v442 = vmul.f32 %v402, %v402
        %v443 = vsub.f32 %v427, %v435
        %v444 = vsub.f32 %v428, %v436
        %v445 = vsub.f32 %v429, %v437
        %v446 = vsub.f32 %v430, %v438
        %v447 = vsub.f32 %v431, %v439
        %v448 = vsub.f32 %v432, %v440
        %v449 = vsub.f32 %v433, %v441
        %v450 = vsub.f32 %v434, %v442
        %v451 = vmax.f32 %v443, 0.0
        %v452 = vmax.f32 %v444, 0.0
        %v453 = vmax.f32 %v445, 0.0
        %v454 = vmax.f32 %v446, 0.0
        %v455 = vmax.f32 %v447, 0.0
        %v456 = vmax.f32 %v448, 0.0
        %v457 = vmax.f32 %v449, 0.0
        %v458 = vmax.f32 %v450, 0.0
        %v459 = vsub.f32 %v320, %v395
        %v460 = vsub.f32 %v321, %v396
        %v461 = vsub.f32 %v322, %v397
        %v462 = vsub.f32 %v323, %v398
        %v463 = vsub.f32 %v324, %v399
        %v464 = vsub.f32 %v325, %v400
        %v465 = vsub.f32 %v326, %v401
        %v466 = vsub.f32 %v327, %v402
        %v467 = vadd.f32 %v451, 1e-05
        %v468 = vadd.f32 %v452, 1e-05
        %v469 = vadd.f32 %v453, 1e-05
        %v470 = vadd.f32 %v454, 1e-05
        %v471 = vadd.f32 %v455, 1e-05
        %v472 = vadd.f32 %v456, 1e-05
        %v473 = vadd.f32 %v457, 1e-05
        %v474 = vadd.f32 %v458, 1e-05
        %v475 = vrsqrt.pop %v467
        %v476 = vrsqrt.pop %v468
        %v477 = vrsqrt.pop %v469
        %v478 = vrsqrt.pop %v470
        %v479 = vrsqrt.pop %v471
        %v480 = vrsqrt.pop %v472
        %v481 = vrsqrt.pop %v473
        %v482 = vrsqrt.pop %v474
        %v483 = vmul.f32 %v459, %v475
        %v484 = vmul.f32 %v460, %v476
        %v485 = vmul.f32 %v461, %v477
        %v486 = vmul.f32 %v462, %v478
        %v487 = vmul.f32 %v463, %v479
        %v488 = vmul.f32 %v464, %v480
        %v489 = vmul.f32 %v465, %v481
        %v490 = vmul.f32 %v466, %v482
        %v491 = vmul.f32 %v483, %v328
        %v492 = vmul.f32 %v484, %v328
        %v493 = vmul.f32 %v485, %v328
        %v494 = vmul.f32 %v486, %v328
        %v495 = vmul.f32 %v487, %v328
        %v496 = vmul.f32 %v488, %v328
        %v497 = vmul.f32 %v489, %v328
        %v498 = vmul.f32 %v490, %v328
        %v499 = vadd.f32 %v491, %v330
        %v500 = vadd.f32 %v492, %v330
        %v501 = vadd.f32 %v493, %v330
        %v502 = vadd.f32 %v494, %v330
        %v503 = vadd.f32 %v495, %v330
        %v504 = vadd.f32 %v496, %v330
        %v505 = vadd.f32 %v497, %v330
        %v506 = vadd.f32 %v498, %v330
        %v507 = vpack.c.bf16 %v500, %v499
        %v508 = vpack.c.bf16 %v502, %v501
        %v509 = vpack.c.bf16 %v504, %v503
        %v510 = vpack.c.bf16 %v506, %v505
        %v527 = vunpack.c.l.b16 %v344
        %v528 = vunpack.c.l.b16 %v345
        %v529 = vunpack.c.l.b16 %v346
        %v530 = vunpack.c.l.b16 %v347
        %v531 = vunpack.c.l.b16 %v348
        %v532 = vunpack.c.l.b16 %v349
        %v533 = vunpack.c.l.b16 %v350
        %v534 = vunpack.c.l.b16 %v351
        %v535 = vunpack.c.l.b16 %v352
        %v536 = vunpack.c.l.b16 %v353
        %v537 = vunpack.c.l.b16 %v354
        %v538 = vunpack.c.l.b16 %v355
        %v539 = vunpack.c.l.b16 %v356
        %v540 = vunpack.c.l.b16 %v357
        %v541 = vunpack.c.l.b16 %v358
        %v542 = vunpack.c.l.b16 %v359
        %v543 = vpack.c.b16 %v528, %v527
        %v544 = vpack.c.b16 %v530, %v529
        %v545 = vpack.c.b16 %v532, %v531
        %v546 = vpack.c.b16 %v534, %v533
        %v547 = vpack.c.b16 %v536, %v535
        %v548 = vpack.c.b16 %v538, %v537
        %v549 = vpack.c.b16 %v540, %v539
        %v550 = vpack.c.b16 %v542, %v541
        %559 = vmatprep.subr.bf16.mxu0 0
        %560 = vmatpush1.bf16.msra.mxu0 %v550
        %561 = vmatprep.subr.bf16.mxu0 0
        %562 = vmatpush1.bf16.msra.mxu0 %v549
        %563 = vmatprep.subr.bf16.mxu0 0
        %564 = vmatpush1.bf16.msra.mxu0 %v548
        %565 = vmatprep.subr.bf16.mxu0 0
        %566 = vmatpush1.bf16.msra.mxu0 %v547
        %567 = vmatprep.subr.bf16.mxu0 0
        %568 = vmatpush1.bf16.msra.mxu0 %v546
        %569 = vmatprep.subr.bf16.mxu0 0
        %570 = vmatpush1.bf16.msra.mxu0 %v545
        %571 = vmatprep.subr.bf16.mxu0 0
        %572 = vmatpush1.bf16.msra.mxu0 %v544
        %573 = vmatprep.subr.bf16.mxu0 0
        %574 = vmatpush1.bf16.msra.mxu0 %v543
        %575 = vmatprep.subr.bf16.mxu0 0
        %576 = vmatpush2.bf16.msra.mxu0 0
        %577 = vmatprep.subr.bf16.mxu0 0
        %578 = vmatpush2.bf16.msra.mxu0 0
        %579 = vmatprep.subr.bf16.mxu0 0
        %580 = vmatpush2.bf16.msra.mxu0 0
        %581 = vmatprep.subr.bf16.mxu0 0
        %582 = vmatpush2.bf16.msra.mxu0 0
        %583 = vmatprep.subr.bf16.mxu0 0
        %584 = vmatpush2.bf16.msra.mxu0 0
        %585 = vmatprep.subr.bf16.mxu0 0
        %586 = vmatpush2.bf16.msra.mxu0 0
        %587 = vmatprep.subr.bf16.mxu0 0
        %588 = vmatpush2.bf16.msra.mxu0 0
        %589 = vmatprep.subr.bf16.mxu0 0
        %590 = vmatpush2.bf16.msra.mxu0 0
        %591 = vmatprep.mubr.bf16.mxu0 0
        %592 = vmatmul.mubr.bf16.gmra.mxu0 %v507
        %v593 = vpop.f32.mrf.mxu0
        %v594 = vadd.f32 0.0, %v593
        %v595 = vpop.f32.mrf.mxu0
        %v596 = vpop.f32.mrf.mxu0
        %v597 = vadd.f32 0.0, %v596
        %v598 = vpop.f32.mrf.mxu0
        %599 = vmatprep.mubr.bf16.mxu0 0
        %600 = vmatmul.mubr.bf16.gmra.mxu0 %v508
        %v601 = vpop.f32.mrf.mxu0
        %v602 = vadd.f32 0.0, %v601
        %v603 = vpop.f32.mrf.mxu0
        %v604 = vpop.f32.mrf.mxu0
        %v605 = vadd.f32 0.0, %v604
        %v606 = vpop.f32.mrf.mxu0
        %607 = vmatprep.mubr.bf16.mxu0 0
        %608 = vmatmul.mubr.bf16.gmra.mxu0 %v509
        %v609 = vpop.f32.mrf.mxu0
        %v610 = vadd.f32 0.0, %v609
        %v611 = vpop.f32.mrf.mxu0
        %v612 = vpop.f32.mrf.mxu0
        %v613 = vadd.f32 0.0, %v612
        %v614 = vpop.f32.mrf.mxu0
        %615 = vmatprep.mubr.bf16.mxu0 0
        %616 = vmatmul.mubr.bf16.gmra.mxu0 %v510
        %v617 = vpop.f32.mrf.mxu0
        %v618 = vadd.f32 0.0, %v617
        %v619 = vpop.f32.mrf.mxu0
        %v620 = vpop.f32.mrf.mxu0
        %v621 = vadd.f32 0.0, %v620
        %v622 = vpop.f32.mrf.mxu0
        %623 = vdwg.mxu0
        %v624 = vmul.f32 %v594, %v332
        %v625 = vmul.f32 %v597, %v332
        %v626 = vmul.f32 %v602, %v332
        %v627 = vmul.f32 %v605, %v332
        %v628 = vmul.f32 %v610, %v332
        %v629 = vmul.f32 %v613, %v332
        %v630 = vmul.f32 %v618, %v332
        %v631 = vmul.f32 %v621, %v332
        %v632 = vadd.f32 %v624, %v334
        %v633 = vadd.f32 %v625, %v334
        %v634 = vadd.f32 %v626, %v334
        %v635 = vadd.f32 %v627, %v334
        %v636 = vadd.f32 %v628, %v334
        %v637 = vadd.f32 %v629, %v334
        %v638 = vadd.f32 %v630, %v334
        %v639 = vadd.f32 %v631, %v334
        %v640 = vmax.f32 %v632, 0.0
        %v641 = vmax.f32 %v633, 0.0
        %v642 = vmax.f32 %v634, 0.0
        %v643 = vmax.f32 %v635, 0.0
        %v644 = vmax.f32 %v636, 0.0
        %v645 = vmax.f32 %v637, 0.0
        %v646 = vmax.f32 %v638, 0.0
        %v647 = vmax.f32 %v639, 0.0
        %v648 = vmul.f32 %v640, %v336
        %v649 = vmul.f32 %v641, %v336
        %v650 = vmul.f32 %v642, %v336
        %v651 = vmul.f32 %v643, %v336
        %v652 = vmul.f32 %v644, %v336
        %v653 = vmul.f32 %v645, %v336
        %v654 = vmul.f32 %v646, %v336
        %v655 = vmul.f32 %v647, %v336
        %v656 = vpack.c.bf16 %v649, %v648
        %v657 = vpack.c.bf16 %v651, %v650
        %v658 = vpack.c.bf16 %v653, %v652
        %v659 = vpack.c.bf16 %v655, %v654
        %v676 = vunpack.c.l.b16 %v362
        %v677 = vunpack.c.l.b16 %v363
        %v678 = vunpack.c.l.b16 %v364
        %v679 = vunpack.c.l.b16 %v365
        %v680 = vunpack.c.l.b16 %v366
        %v681 = vunpack.c.l.b16 %v367
        %v682 = vunpack.c.l.b16 %v368
        %v683 = vunpack.c.l.b16 %v369
        %v684 = vunpack.c.l.b16 %v370
        %v685 = vunpack.c.l.b16 %v371
        %v686 = vunpack.c.l.b16 %v372
        %v687 = vunpack.c.l.b16 %v373
        %v688 = vunpack.c.l.b16 %v374
        %v689 = vunpack.c.l.b16 %v375
        %v690 = vunpack.c.l.b16 %v376
        %v691 = vunpack.c.l.b16 %v377
        %v692 = vpack.c.b16 %v677, %v676
        %v693 = vpack.c.b16 %v679, %v678
        %v694 = vpack.c.b16 %v681, %v680
        %v695 = vpack.c.b16 %v683, %v682
        %v696 = vpack.c.b16 %v685, %v684
        %v697 = vpack.c.b16 %v687, %v686
        %v698 = vpack.c.b16 %v689, %v688
        %v699 = vpack.c.b16 %v691, %v690
        %708 = vmatprep.subr.bf16.mxu0 0
        %709 = vmatpush1.bf16.msra.mxu0 %v699
        %710 = vmatprep.subr.bf16.mxu0 0
        %711 = vmatpush1.bf16.msra.mxu0 %v698
        %712 = vmatprep.subr.bf16.mxu0 0
        %713 = vmatpush1.bf16.msra.mxu0 %v697
        %714 = vmatprep.subr.bf16.mxu0 0
        %715 = vmatpush1.bf16.msra.mxu0 %v696
        %716 = vmatprep.subr.bf16.mxu0 0
        %717 = vmatpush1.bf16.msra.mxu0 %v695
        %718 = vmatprep.subr.bf16.mxu0 0
        %719 = vmatpush1.bf16.msra.mxu0 %v694
        %720 = vmatprep.subr.bf16.mxu0 0
        %721 = vmatpush1.bf16.msra.mxu0 %v693
        %722 = vmatprep.subr.bf16.mxu0 0
        %723 = vmatpush1.bf16.msra.mxu0 %v692
        %724 = vmatprep.subr.bf16.mxu0 0
        %725 = vmatpush2.bf16.msra.mxu0 0
        %726 = vmatprep.subr.bf16.mxu0 0
        %727 = vmatpush2.bf16.msra.mxu0 0
        %728 = vmatprep.subr.bf16.mxu0 0
        %729 = vmatpush2.bf16.msra.mxu0 0
        %730 = vmatprep.subr.bf16.mxu0 0
        %731 = vmatpush2.bf16.msra.mxu0 0
        %732 = vmatprep.subr.bf16.mxu0 0
        %733 = vmatpush2.bf16.msra.mxu0 0
        %734 = vmatprep.subr.bf16.mxu0 0
        %735 = vmatpush2.bf16.msra.mxu0 0
        %736 = vmatprep.subr.bf16.mxu0 0
        %737 = vmatpush2.bf16.msra.mxu0 0
        %738 = vmatprep.subr.bf16.mxu0 0
        %739 = vmatpush2.bf16.msra.mxu0 0
        %740 = vmatprep.mubr.bf16.mxu0 0
        %741 = vmatmul.mubr.bf16.gmra.mxu0 %v656
        %v742 = vpop.f32.mrf.mxu0
        %v743 = vadd.f32 0.0, %v742
        %v744 = vpop.f32.mrf.mxu0
        %v745 = vpop.f32.mrf.mxu0
        %v746 = vadd.f32 0.0, %v745
        %v747 = vpop.f32.mrf.mxu0
        %748 = vmatprep.mubr.bf16.mxu0 0
        %749 = vmatmul.mubr.bf16.gmra.mxu0 %v657
        %v750 = vpop.f32.mrf.mxu0
        %v751 = vadd.f32 0.0, %v750
        %v752 = vpop.f32.mrf.mxu0
        %v753 = vpop.f32.mrf.mxu0
        %v754 = vadd.f32 0.0, %v753
        %v755 = vpop.f32.mrf.mxu0
        %756 = vmatprep.mubr.bf16.mxu0 0
        %757 = vmatmul.mubr.bf16.gmra.mxu0 %v658
        %v758 = vpop.f32.mrf.mxu0
        %v759 = vadd.f32 0.0, %v758
        %v760 = vpop.f32.mrf.mxu0
        %v761 = vpop.f32.mrf.mxu0
        %v762 = vadd.f32 0.0, %v761
        %v763 = vpop.f32.mrf.mxu0
        %764 = vmatprep.mubr.bf16.mxu0 0
        %765 = vmatmul.mubr.bf16.gmra.mxu0 %v659
        %v766 = vpop.f32.mrf.mxu0
        %v767 = vadd.f32 0.0, %v766
        %v768 = vpop.f32.mrf.mxu0
        %v769 = vpop.f32.mrf.mxu0
        %v770 = vadd.f32 0.0, %v769
        %v771 = vpop.f32.mrf.mxu0
        %772 = vdwg.mxu0
        %v773 = vmul.f32 %v743, %v338
        %v774 = vmul.f32 %v746, %v338
        %v775 = vmul.f32 %v751, %v338
        %v776 = vmul.f32 %v754, %v338
        %v777 = vmul.f32 %v759, %v338
        %v778 = vmul.f32 %v762, %v338
        %v779 = vmul.f32 %v767, %v338
        %v780 = vmul.f32 %v770, %v338
        %v781 = vadd.f32 %v773, %v340
        %v782 = vadd.f32 %v774, %v340
        %v783 = vadd.f32 %v775, %v340
        %v784 = vadd.f32 %v776, %v340
        %v785 = vadd.f32 %v777, %v340
        %v786 = vadd.f32 %v778, %v340
        %v787 = vadd.f32 %v779, %v340
        %v788 = vadd.f32 %v780, %v340
        %v789 = vadd.f32 %v320, %v781
        %v790 = vadd.f32 %v321, %v782
        %v791 = vadd.f32 %v322, %v783
        %v792 = vadd.f32 %v323, %v784
        %v793 = vadd.f32 %v324, %v785
        %v794 = vadd.f32 %v325, %v786
        %v795 = vadd.f32 %v326, %v787
        %v796 = vadd.f32 %v327, %v788
        %797 = vst [vmem:[%s296] sm:$0xff] %v789
        %798 = vst [vmem:[%s296 + $0x8] sm:$0xff] %v790
        %799 = vst [vmem:[%s296 + $0x10] sm:$0xff] %v791
        %800 = vst [vmem:[%s296 + $0x18] sm:$0xff] %v792
        %801 = vst [vmem:[%s296 + $0x20] sm:$0xff] %v793
        %802 = vst [vmem:[%s296 + $0x28] sm:$0xff] %v794
        %803 = vst [vmem:[%s296 + $0x30] sm:$0xff] %v795
        %804 = vst [vmem:[%s296 + $0x38] sm:$0xff] %v796
        %s805 = sand.u32 %s139, 1
        %s806 = scalar_lea.sflag [#allocation4], %s805
        %s807 = sand.u32 %s139, 1
        %s808 = smul.addr %s807, 64
        %s809 = scalar_lea.vmem [#allocation10], %s808
        // Predicated region
        $region57: #{tpu_custom_call.1} parent=35 // pred_check
          %p810 = pneg %p149
        $region58: #{tpu_custom_call.1} parent=35 // pred_check_branch
          %812 = sbr.rel (%p810) target = $region60
        $region59: #{tpu_custom_call.1} parent=35 // pred_region
          %s813 = smul.u32 8, %s29
          %s815 = ssub.s32 1024, 1024
          %816 = vsyncadd %s806, %s815
          %s817 = smul.addr %s813, 128
          %s818 = scalar_lea.hbm %s4, %s817
          %s819 = sshll.u32 %s809, 4
          %s820 = int_to_ptr.vmem [resolvable:$true] %s819
          %825 = dma.vmem_to_hbm [thread:$0]  %s820, 1024, %s818, %s806, 128, 128, 8
        $region60: #{tpu_custom_call.1} parent=35 // pred_fallthru
          _
      $region36: #{tpu_custom_call.1} parent=5 // pred_fallthru
        _
      %p826 = scmp.le.s32.totalorder 2, %s20
      // Predicated region
      $region61: #{tpu_custom_call.1} parent=5 // pred_check
        %p827 = pneg %p826
      $region62: #{tpu_custom_call.1} parent=5 // pred_check_branch
        %829 = sbr.rel (%p827) target = $region64
      $region63: #{tpu_custom_call.1} parent=5 // pred_region
        %s830 = ssub.s32 %s20, 2
        // Predicated region
        $region65: #{tpu_custom_call.1} parent=63 // pred_check
          %p831 = pneg %p155
        $region66: #{tpu_custom_call.1} parent=63 // pred_check_branch
          %833 = sbr.rel (%p831) target = $region68
        $region67: #{tpu_custom_call.1} parent=63 // pred_region
          %s834 = sand.u32 %s140, 1
          %s835 = scalar_lea.sflag [#allocation4], %s834
          %s836 = sand.u32 %s140, 1
          %s837 = smul.addr %s836, 64
          %s838 = scalar_lea.vmem [#allocation10], %s837
          %839 = dma.done %s835, 1024
        $region68: #{tpu_custom_call.1} parent=63 // pred_fallthru
          _
      $region64: #{tpu_custom_call.1} parent=5 // pred_fallthru
        _
    $region6: #{tpu_custom_call.1} parent=1 // loop_footer
      %s24 = sadd.s32 1, %s20
    $region7: #{tpu_custom_call.1} parent=1 // loop_footer_branch
      %19 = sbr.rel target = $region3
    $region8: #{tpu_custom_call.1} parent=1 // loop_exit
      _
    %840 = vsyncpa [#allocation3], 1
    %s841 = scalar_lea.sflag [#allocation3], 1
    %842 = vsyncpa %s841, 1
    %843 = vsyncpa [#allocation6], 1
    %s844 = scalar_lea.sflag [#allocation6], 1
    %845 = vsyncpa %s844, 1
    %846 = vsyncpa [#allocation9], 1
    %847 = vsyncpa [#allocation4], 1
    %s848 = scalar_lea.sflag [#allocation4], 1
    %849 = vsyncpa %s848, 1

</llo_original>
